<compile_context>
chip_gen: v7x
topology: tpu7x:2x2x1
jax: 0.10.0
libtpu: 0.0.40
codegen_flags: <defaults>
</compile_context>

<pallas_src>
import functools

import jax
import jax.numpy as jnp
from jax import lax
from jax.experimental import pallas as pl
from jax.experimental.pallas import tpu as pltpu


_N_LAYERS = 6
_ACTS = (jax.nn.relu, jax.nn.relu, jnp.tanh, jax.nn.relu, jax.nn.relu, jnp.tanh)


def _round_up(v, m):
    return -(-v // m) * m


def _mlp2layers_tanh_kernel(x_ref, *refs):
    """x_ref: (tb, in1_pad) natural layout.
    refs = (w1, b1, w2, b2, ..., w6, b6, o_ref); wk: (outk_pad, ink_pad),
    bk: (outk_pad, 1), o_ref: (out6_pad, tb)."""
    o_ref = refs[-1]
    wb = refs[:-1]

    x = x_ref[...]                               # (tb, in1_pad), batch on sublanes
    w0 = wb[0][...]                              # (out1_pad, in1_pad)
    b0 = wb[1][...]                              # (out1_pad, 1)
    # Contract the feature axis of both operands: (o1, in1) x (tb, in1) -> (o1, tb).
    # Result has batch on the 128-lane axis for all subsequent layers/stores.
    h = _ACTS[0](
        lax.dot_general(w0, x, (((1,), (1,)), ((), ())),
                        preferred_element_type=jnp.float32) + b0)

    # Layers 2..6: plain (out, in) @ (in, tb) MXU matmuls at per-layer padded
    # sizes.  Zero-padded weight rows/cols and bias rows keep padded activation
    # rows exactly zero (relu(0)=tanh(0)=0).
    for k in range(1, _N_LAYERS):
        w = wb[2 * k][...]
        b = wb[2 * k + 1][...]
        h = _ACTS[k](jnp.dot(w, h, preferred_element_type=jnp.float32) + b)

    o_ref[...] = h.astype(o_ref.dtype)


def pack_params(params):
    """One-time preprocessing: zero-pad each (out, in) weight / (out,) bias to
    8-aligned per-layer shapes.  Do NOT call this per forward pass."""
    assert len(params) == _N_LAYERS
    dims = [params[0][0].shape[1]] + [w.shape[0] for w, _ in params]
    pads = [_round_up(d, 8) for d in dims]
    ws, bs = [], []
    for k, (w, b) in enumerate(params):
        o, i = w.shape
        op, ip = pads[k + 1], pads[k]
        ws.append(jnp.zeros((op, ip), jnp.float32).at[:o, :i].set(w.astype(jnp.float32)))
        bs.append(jnp.zeros((op, 1), jnp.float32).at[:o, 0].set(
            b.reshape(-1).astype(jnp.float32)))
    return ws, bs, tuple(dims)


def mlp2layers_tanh_forward(x, packed, *, tb=512):
    """x: (B, in_feature1); packed = pack_params(params).
    tb: batch tile on the lane axis (multiple of 128). Default 512 amortizes
    per-grid-step overhead; keep B_pad//tb >= 2 at large batch so both v7x
    TensorCores get work via the "parallel" grid axis."""
    assert tb % 128 == 0
    ws, bs, dims = packed
    B, in1 = x.shape
    assert in1 == dims[0]
    in1_pad = ws[0].shape[1]
    out_dim = dims[-1]
    out_pad = ws[-1].shape[0]

    # Shrink the tile for small batches; pad batch to a tile multiple.
    tb_eff = max(128, min(tb, _round_up(B, 128)))
    B_pad = _round_up(B, tb_eff)
    if B_pad != B or in1_pad != in1:
        x = jnp.pad(x, ((0, B_pad - B), (0, in1_pad - in1)))

    in_specs = [pl.BlockSpec((tb_eff, in1_pad), lambda i: (i, 0))]   # x tile (contiguous DMA)
    operands = [x]
    for w, b in zip(ws, bs):
        in_specs.append(pl.BlockSpec(w.shape, lambda i: (0, 0)))     # resident weight
        in_specs.append(pl.BlockSpec(b.shape, lambda i: (0, 0)))     # resident bias
        operands.extend((w, b))

    out_t = pl.pallas_call(
        _mlp2layers_tanh_kernel,
        out_shape=jax.ShapeDtypeStruct((out_pad, B_pad), x.dtype),
        grid_spec=pltpu.PrefetchScalarGridSpec(
            num_scalar_prefetch=0,
            grid=(B_pad // tb_eff,),
            in_specs=in_specs,
            out_specs=pl.BlockSpec((out_pad, tb_eff), lambda i: (0, i)),
        ),
        compiler_params=pltpu.CompilerParams(
            dimension_semantics=("parallel",)),
    )(*operands)

    # Drop feature/batch padding; output transpose is only out_dim*B floats.
    return out_t[:out_dim, :B].T


def _xavier_uniform(key, fan_out, fan_in, dtype=jnp.float32):
    # torch.nn.init.xavier_uniform_ (gain=1) on a (out, in) weight.
    bound = (6.0 / (fan_in + fan_out)) ** 0.5
    return jax.random.uniform(key, (fan_out, fan_in), dtype, -bound, bound)


def _bias_init(key, fan_in, fan_out, dtype=jnp.float32):
    # torch default nn.Linear bias init: U(-1/sqrt(fan_in), 1/sqrt(fan_in)).
    bound = 1.0 / (fan_in ** 0.5)
    return jax.random.uniform(key, (fan_out,), dtype, -bound, bound)


def make_params(key, feature_sizes):
    """feature_sizes = [in_feature1, out_feature1, ..., out_feature6]."""
    params = []
    keys = jax.random.split(key, 2 * (len(feature_sizes) - 1))
    for layer, (fi, fo) in enumerate(zip(feature_sizes[:-1], feature_sizes[1:])):
        w = _xavier_uniform(keys[2 * layer], fo, fi)      # (out, in) — PyTorch layout
        b = _bias_init(keys[2 * layer + 1], fi, fo)       # (out,)
        params.append((w, b))
    return params


def _reference_forward(x, params):
    h = x
    for (w, b), act in zip(params, _ACTS):
        h = act(h @ w.T + b)
    return h


if __name__ == "__main__":
    key = jax.random.PRNGKey(0)
    k_x, k_x2, k_x3, k_p = jax.random.split(key, 4)

    # MLP2LayersTanH(in_feature1=16, out1=32, out2=64, out3=32, out4=32, out5=16, out6=8)
    feature_sizes = [16, 32, 64, 32, 32, 16, 8]
    params = make_params(k_p, feature_sizes)
    packed = pack_params(params)          # one-time padding/packing (not per call)

    # Small batch: single 128-lane tile (tb shrinks automatically), grid=(1,).
    x_small = jax.random.normal(k_x, (16, feature_sizes[0]), dtype=jnp.float32)
    out_small = jax.block_until_ready(mlp2layers_tanh_forward(x_small, packed))
    ref_small = _reference_forward(x_small, params)
    assert out_small.shape == (16, feature_sizes[-1])
    assert jnp.allclose(out_small, ref_small, atol=1e-5, rtol=1e-5), "mismatch (small batch)"

    # Ragged batch: exercises batch padding inside a single tile.
    x_mid = jax.random.normal(k_x3, (300, feature_sizes[0]), dtype=jnp.float32)
    out_mid = jax.block_until_ready(mlp2layers_tanh_forward(x_mid, packed))
    ref_mid = _reference_forward(x_mid, params)
    assert out_mid.shape == (300, feature_sizes[-1])
    assert jnp.allclose(out_mid, ref_mid, atol=1e-5, rtol=1e-5), "mismatch (ragged batch)"

    # Large batch: tb=512 -> grid=(2,), parallel axis feeds both v7x TensorCores.
    x_big = jax.random.normal(k_x2, (1024, feature_sizes[0]), dtype=jnp.float32)
    out_big = jax.block_until_ready(mlp2layers_tanh_forward(x_big, packed, tb=512))
    ref_big = _reference_forward(x_big, params)
    assert out_big.shape == (1024, feature_sizes[-1])
    assert jnp.allclose(out_big, ref_big, atol=1e-5, rtol=1e-5), "mismatch (multi-tile batch)"

    print("KERNEL_OK")
</pallas_src>

<mosaic_0001>
module attributes {stable_mosaic.version = 11 : i64} {
  func.func @_mlp2layers_tanh_kernel(%arg0: i32, %arg1: memref<128x16xf32, #tpu.memory_space<vmem>>, %arg2: memref<32x16xf32, #tpu.memory_space<vmem>>, %arg3: memref<32x1xf32, #tpu.memory_space<vmem>>, %arg4: memref<64x32xf32, #tpu.memory_space<vmem>>, %arg5: memref<64x1xf32, #tpu.memory_space<vmem>>, %arg6: memref<32x64xf32, #tpu.memory_space<vmem>>, %arg7: memref<32x1xf32, #tpu.memory_space<vmem>>, %arg8: memref<32x32xf32, #tpu.memory_space<vmem>>, %arg9: memref<32x1xf32, #tpu.memory_space<vmem>>, %arg10: memref<16x32xf32, #tpu.memory_space<vmem>>, %arg11: memref<16x1xf32, #tpu.memory_space<vmem>>, %arg12: memref<8x16xf32, #tpu.memory_space<vmem>>, %arg13: memref<8x1xf32, #tpu.memory_space<vmem>>, %arg14: memref<8x128xf32, #tpu.memory_space<vmem>>) attributes {dimension_semantics = [#tpu.dimension_semantics<parallel>], iteration_bounds = array<i64: 1>, scalar_prefetch = 0 : i64, scratch_operands = 0 : i64, tpu.core_type = #tpu.core_type<tc>, window_params = [{transform_indices = @transform_0, window_bounds = array<i64: 128, 16>}, {pipeline_mode = #tpu.pipeline_mode<synchronous>, transform_indices = @transform_1, window_bounds = array<i64: 32, 16>}, {pipeline_mode = #tpu.pipeline_mode<synchronous>, transform_indices = @transform_2, window_bounds = array<i64: 32, 1>}, {pipeline_mode = #tpu.pipeline_mode<synchronous>, transform_indices = @transform_3, window_bounds = array<i64: 64, 32>}, {pipeline_mode = #tpu.pipeline_mode<synchronous>, transform_indices = @transform_4, window_bounds = array<i64: 64, 1>}, {pipeline_mode = #tpu.pipeline_mode<synchronous>, transform_indices = @transform_5, window_bounds = array<i64: 32, 64>}, {pipeline_mode = #tpu.pipeline_mode<synchronous>, transform_indices = @transform_6, window_bounds = array<i64: 32, 1>}, {pipeline_mode = #tpu.pipeline_mode<synchronous>, transform_indices = @transform_7, window_bounds = array<i64: 32, 32>}, {pipeline_mode = #tpu.pipeline_mode<synchronous>, transform_indices = @transform_8, window_bounds = array<i64: 32, 1>}, {pipeline_mode = #tpu.pipeline_mode<synchronous>, transform_indices = @transform_9, window_bounds = array<i64: 16, 32>}, {pipeline_mode = #tpu.pipeline_mode<synchronous>, transform_indices = @transform_10, window_bounds = array<i64: 16, 1>}, {pipeline_mode = #tpu.pipeline_mode<synchronous>, transform_indices = @transform_11, window_bounds = array<i64: 8, 16>}, {pipeline_mode = #tpu.pipeline_mode<synchronous>, transform_indices = @transform_12, window_bounds = array<i64: 8, 1>}, {transform_indices = @transform_13, window_bounds = array<i64: 8, 128>}]} {
    %c0 = arith.constant 0 : index
    %c0_0 = arith.constant 0 : index
    %0 = vector.load %arg1[%c0, %c0_0] : memref<128x16xf32, #tpu.memory_space<vmem>>, vector<128x16xf32>
    %c0_1 = arith.constant 0 : index
    %c0_2 = arith.constant 0 : index
    %1 = vector.load %arg2[%c0_1, %c0_2] : memref<32x16xf32, #tpu.memory_space<vmem>>, vector<32x16xf32>
    %c0_3 = arith.constant 0 : index
    %c0_4 = arith.constant 0 : index
    %2 = vector.load %arg3[%c0_3, %c0_4] : memref<32x1xf32, #tpu.memory_space<vmem>>, vector<32x1xf32>
    %cst = arith.constant dense<0.000000e+00> : vector<32x128xf32>
    %3 = tpu.matmul %1, %0, %cst {dimension_numbers = #tpu.dot_dimension_numbers<[1], [1], [0], [0], [0, 0, 1, 0], [], []>} : vector<32x16xf32>, vector<128x16xf32>, vector<32x128xf32> -> vector<32x128xf32>
    %4 = vector.broadcast %2 : vector<32x1xf32> to vector<32x128xf32>
    %5 = arith.addf %3, %4 : vector<32x128xf32>
    %cst_5 = arith.constant 0.000000e+00 : f32
    %6 = vector.broadcast %cst_5 : f32 to vector<32x128xf32>
    %7 = arith.maximumf %5, %6 : vector<32x128xf32>
    %c0_6 = arith.constant 0 : index
    %c0_7 = arith.constant 0 : index
    %8 = vector.load %arg4[%c0_6, %c0_7] : memref<64x32xf32, #tpu.memory_space<vmem>>, vector<64x32xf32>
    %c0_8 = arith.constant 0 : index
    %c0_9 = arith.constant 0 : index
    %9 = vector.load %arg5[%c0_8, %c0_9] : memref<64x1xf32, #tpu.memory_space<vmem>>, vector<64x1xf32>
    %cst_10 = arith.constant dense<0.000000e+00> : vector<64x128xf32>
    %10 = tpu.matmul %8, %7, %cst_10 {dimension_numbers = #tpu.dot_dimension_numbers<[1], [0], [0], [1], [0, 0, 1, 1], [], []>} : vector<64x32xf32>, vector<32x128xf32>, vector<64x128xf32> -> vector<64x128xf32>
    %11 = vector.broadcast %9 : vector<64x1xf32> to vector<64x128xf32>
    %12 = arith.addf %10, %11 : vector<64x128xf32>
    %cst_11 = arith.constant 0.000000e+00 : f32
    %13 = vector.broadcast %cst_11 : f32 to vector<64x128xf32>
    %14 = arith.maximumf %12, %13 : vector<64x128xf32>
    %c0_12 = arith.constant 0 : index
    %c0_13 = arith.constant 0 : index
    %15 = vector.load %arg6[%c0_12, %c0_13] : memref<32x64xf32, #tpu.memory_space<vmem>>, vector<32x64xf32>
    %c0_14 = arith.constant 0 : index
    %c0_15 = arith.constant 0 : index
    %16 = vector.load %arg7[%c0_14, %c0_15] : memref<32x1xf32, #tpu.memory_space<vmem>>, vector<32x1xf32>
    %cst_16 = arith.constant dense<0.000000e+00> : vector<32x128xf32>
    %17 = tpu.matmul %15, %14, %cst_16 {dimension_numbers = #tpu.dot_dimension_numbers<[1], [0], [0], [1], [0, 0, 1, 1], [], []>} : vector<32x64xf32>, vector<64x128xf32>, vector<32x128xf32> -> vector<32x128xf32>
    %18 = vector.broadcast %16 : vector<32x1xf32> to vector<32x128xf32>
    %19 = arith.addf %17, %18 : vector<32x128xf32>
    %20 = math.tanh %19 : vector<32x128xf32>
    %c0_17 = arith.constant 0 : index
    %c0_18 = arith.constant 0 : index
    %21 = vector.load %arg8[%c0_17, %c0_18] : memref<32x32xf32, #tpu.memory_space<vmem>>, vector<32x32xf32>
    %c0_19 = arith.constant 0 : index
    %c0_20 = arith.constant 0 : index
    %22 = vector.load %arg9[%c0_19, %c0_20] : memref<32x1xf32, #tpu.memory_space<vmem>>, vector<32x1xf32>
    %cst_21 = arith.constant dense<0.000000e+00> : vector<32x128xf32>
    %23 = tpu.matmul %21, %20, %cst_21 {dimension_numbers = #tpu.dot_dimension_numbers<[1], [0], [0], [1], [0, 0, 1, 1], [], []>} : vector<32x32xf32>, vector<32x128xf32>, vector<32x128xf32> -> vector<32x128xf32>
    %24 = vector.broadcast %22 : vector<32x1xf32> to vector<32x128xf32>
    %25 = arith.addf %23, %24 : vector<32x128xf32>
    %cst_22 = arith.constant 0.000000e+00 : f32
    %26 = vector.broadcast %cst_22 : f32 to vector<32x128xf32>
    %27 = arith.maximumf %25, %26 : vector<32x128xf32>
    %c0_23 = arith.constant 0 : index
    %c0_24 = arith.constant 0 : index
    %28 = vector.load %arg10[%c0_23, %c0_24] : memref<16x32xf32, #tpu.memory_space<vmem>>, vector<16x32xf32>
    %c0_25 = arith.constant 0 : index
    %c0_26 = arith.constant 0 : index
    %29 = vector.load %arg11[%c0_25, %c0_26] : memref<16x1xf32, #tpu.memory_space<vmem>>, vector<16x1xf32>
    %cst_27 = arith.constant dense<0.000000e+00> : vector<16x128xf32>
    %30 = tpu.matmul %28, %27, %cst_27 {dimension_numbers = #tpu.dot_dimension_numbers<[1], [0], [0], [1], [0, 0, 1, 1], [], []>} : vector<16x32xf32>, vector<32x128xf32>, vector<16x128xf32> -> vector<16x128xf32>
    %31 = vector.broadcast %29 : vector<16x1xf32> to vector<16x128xf32>
    %32 = arith.addf %30, %31 : vector<16x128xf32>
    %cst_28 = arith.constant 0.000000e+00 : f32
    %33 = vector.broadcast %cst_28 : f32 to vector<16x128xf32>
    %34 = arith.maximumf %32, %33 : vector<16x128xf32>
    %c0_29 = arith.constant 0 : index
    %c0_30 = arith.constant 0 : index
    %35 = vector.load %arg12[%c0_29, %c0_30] : memref<8x16xf32, #tpu.memory_space<vmem>>, vector<8x16xf32>
    %c0_31 = arith.constant 0 : index
    %c0_32 = arith.constant 0 : index
    %36 = vector.load %arg13[%c0_31, %c0_32] : memref<8x1xf32, #tpu.memory_space<vmem>>, vector<8x1xf32>
    %cst_33 = arith.constant dense<0.000000e+00> : vector<8x128xf32>
    %37 = tpu.matmul %35, %34, %cst_33 {dimension_numbers = #tpu.dot_dimension_numbers<[1], [0], [0], [1], [0, 0, 1, 1], [], []>} : vector<8x16xf32>, vector<16x128xf32>, vector<8x128xf32> -> vector<8x128xf32>
    %38 = vector.broadcast %36 : vector<8x1xf32> to vector<8x128xf32>
    %39 = arith.addf %37, %38 : vector<8x128xf32>
    %40 = math.tanh %39 : vector<8x128xf32>
    %c0_34 = arith.constant 0 : index
    %c0_35 = arith.constant 0 : index
    %41 = vector.load %arg14[%c0_34, %c0_35] : memref<8x128xf32, #tpu.memory_space<vmem>>, vector<8x128xf32>
    tpu.vector_store %arg14[%c0_34, %c0_35], %40 {strides = array<i32>} : memref<8x128xf32, #tpu.memory_space<vmem>>, vector<8x128xf32>,
    return
  }
  func.func @transform_0(%arg0: i32) -> (i32, i32) {
    %c0_i32 = arith.constant 0 : i32
    %c0_i32_0 = arith.constant 0 : i32
    return %arg0, %c0_i32 : i32, i32
  }
  func.func @transform_1(%arg0: i32) -> (i32, i32) {
    %c0_i32 = arith.constant 0 : i32
    %c0_i32_0 = arith.constant 0 : i32
    %c0_i32_1 = arith.constant 0 : i32
    return %c0_i32, %c0_i32_0 : i32, i32
  }
  func.func @transform_2(%arg0: i32) -> (i32, i32) {
    %c0_i32 = arith.constant 0 : i32
    %c0_i32_0 = arith.constant 0 : i32
    %c0_i32_1 = arith.constant 0 : i32
    return %c0_i32, %c0_i32_0 : i32, i32
  }
  func.func @transform_3(%arg0: i32) -> (i32, i32) {
    %c0_i32 = arith.constant 0 : i32
    %c0_i32_0 = arith.constant 0 : i32
    %c0_i32_1 = arith.constant 0 : i32
    return %c0_i32, %c0_i32_0 : i32, i32
  }
  func.func @transform_4(%arg0: i32) -> (i32, i32) {
    %c0_i32 = arith.constant 0 : i32
    %c0_i32_0 = arith.constant 0 : i32
    %c0_i32_1 = arith.constant 0 : i32
    return %c0_i32, %c0_i32_0 : i32, i32
  }
  func.func @transform_5(%arg0: i32) -> (i32, i32) {
    %c0_i32 = arith.constant 0 : i32
    %c0_i32_0 = arith.constant 0 : i32
    %c0_i32_1 = arith.constant 0 : i32
    return %c0_i32, %c0_i32_0 : i32, i32
  }
  func.func @transform_6(%arg0: i32) -> (i32, i32) {
    %c0_i32 = arith.constant 0 : i32
    %c0_i32_0 = arith.constant 0 : i32
    %c0_i32_1 = arith.constant 0 : i32
    return %c0_i32, %c0_i32_0 : i32, i32
  }
  func.func @transform_7(%arg0: i32) -> (i32, i32) {
    %c0_i32 = arith.constant 0 : i32
    %c0_i32_0 = arith.constant 0 : i32
    %c0_i32_1 = arith.constant 0 : i32
    return %c0_i32, %c0_i32_0 : i32, i32
  }
  func.func @transform_8(%arg0: i32) -> (i32, i32) {
    %c0_i32 = arith.constant 0 : i32
    %c0_i32_0 = arith.constant 0 : i32
    %c0_i32_1 = arith.constant 0 : i32
    return %c0_i32, %c0_i32_0 : i32, i32
  }
  func.func @transform_9(%arg0: i32) -> (i32, i32) {
    %c0_i32 = arith.constant 0 : i32
    %c0_i32_0 = arith.constant 0 : i32
    %c0_i32_1 = arith.constant 0 : i32
    return %c0_i32, %c0_i32_0 : i32, i32
  }
  func.func @transform_10(%arg0: i32) -> (i32, i32) {
    %c0_i32 = arith.constant 0 : i32
    %c0_i32_0 = arith.constant 0 : i32
    %c0_i32_1 = arith.constant 0 : i32
    return %c0_i32, %c0_i32_0 : i32, i32
  }
  func.func @transform_11(%arg0: i32) -> (i32, i32) {
    %c0_i32 = arith.constant 0 : i32
    %c0_i32_0 = arith.constant 0 : i32
    %c0_i32_1 = arith.constant 0 : i32
    return %c0_i32, %c0_i32_0 : i32, i32
  }
  func.func @transform_12(%arg0: i32) -> (i32, i32) {
    %c0_i32 = arith.constant 0 : i32
    %c0_i32_0 = arith.constant 0 : i32
    %c0_i32_1 = arith.constant 0 : i32
    return %c0_i32, %c0_i32_0 : i32, i32
  }
  func.func @transform_13(%arg0: i32) -> (i32, i32) {
    %c0_i32 = arith.constant 0 : i32
    %c0_i32_0 = arith.constant 0 : i32
    return %c0_i32, %arg0 : i32, i32
  }
}

</mosaic_0001>

<llo_original>
// kernel: tpu_custom_call.1
$region0: #{tpu_custom_call.1}
  #allocation0 [shape = 'u32[]', space=smem, size = 0x4, offset = 0x4, fixed_abs, tag = 'smem constant byte address 0x4 - core index']
  #allocation1 [shape = 'u32[144,128]{1,0:T(1,128)}', space=vmem, size = 0x12000, scoped, tag = 'internal scratch']
  %s0 = inlined_call_operand.vmem [shape: f32[128,16], index: 0, kind: input, shape index: {}]
  %s1 = inlined_call_operand.vmem [shape: f32[32,16], index: 1, kind: input, shape index: {}]
  %s2 = inlined_call_operand.vmem [shape: f32[32,1], index: 2, kind: input, shape index: {}]
  %s3 = inlined_call_operand.vmem [shape: f32[64,32], index: 3, kind: input, shape index: {}]
  %s4 = inlined_call_operand.vmem [shape: f32[64,1], index: 4, kind: input, shape index: {}]
  %s5 = inlined_call_operand.vmem [shape: f32[32,64], index: 5, kind: input, shape index: {}]
  %s6 = inlined_call_operand.vmem [shape: f32[32,1], index: 6, kind: input, shape index: {}]
  %s7 = inlined_call_operand.vmem [shape: f32[32,32], index: 7, kind: input, shape index: {}]
  %s8 = inlined_call_operand.vmem [shape: f32[32,1], index: 8, kind: input, shape index: {}]
  %s9 = inlined_call_operand.vmem [shape: f32[16,32], index: 9, kind: input, shape index: {}]
  %s10 = inlined_call_operand.vmem [shape: f32[16,1], index: 10, kind: input, shape index: {}]
  %s11 = inlined_call_operand.vmem [shape: f32[8,16], index: 11, kind: input, shape index: {}]
  %s12 = inlined_call_operand.vmem [shape: f32[8,1], index: 12, kind: input, shape index: {}]
  %s13 = inlined_call_operand.hbm [shape: f32[8,128], index: 13, kind: output, shape index: {}]
  %s14 = sld [smem:[#allocation0]]
  $region62: #{tpu_custom_call.1} parent=0
    _
  %s16 = ssub.s32 1, %s14
  %s17 = scalar_select 0, %s16, %s14
  $region1: #{tpu_custom_call.1} parent=0
    #allocation2 [shape = 'u8[4096]{0}', space=vmem, size = 0x1000, scoped, tag = 'output window, operand 0, single buffered']
    #allocation3 [shape = 's32[1]{0}', space=sflag, size = 0x4, scoped, tag = 'scoped memory for tpu_custom_call.1']
    %18 = vsyncpa [#allocation3], 0
    // Predicated region
    $region2: #{tpu_custom_call.1} parent=1 // pred_check
      _
    $region3: #{tpu_custom_call.1} parent=1 // pred_check_branch
      %20 = sbr.rel (0) target = $region5
    $region4: #{tpu_custom_call.1} parent=1 // pred_region
      _
    $region5: #{tpu_custom_call.1} parent=1 // pred_fallthru
      _
    // Predicated region
    $region6: #{tpu_custom_call.1} parent=1 // pred_check
      _
    $region7: #{tpu_custom_call.1} parent=1 // pred_check_branch
      %22 = sbr.rel (0) target = $region9
    $region8: #{tpu_custom_call.1} parent=1 // pred_region
      _
    $region9: #{tpu_custom_call.1} parent=1 // pred_fallthru
      _
    // Predicated region
    $region10: #{tpu_custom_call.1} parent=1 // pred_check
      _
    $region11: #{tpu_custom_call.1} parent=1 // pred_check_branch
      %24 = sbr.rel (0) target = $region13
    $region12: #{tpu_custom_call.1} parent=1 // pred_region
      _
    $region13: #{tpu_custom_call.1} parent=1 // pred_fallthru
      _
    // Predicated region
    $region14: #{tpu_custom_call.1} parent=1 // pred_check
      _
    $region15: #{tpu_custom_call.1} parent=1 // pred_check_branch
      %26 = sbr.rel (0) target = $region17
    $region16: #{tpu_custom_call.1} parent=1 // pred_region
      _
    $region17: #{tpu_custom_call.1} parent=1 // pred_fallthru
      _
    // Predicated region
    $region18: #{tpu_custom_call.1} parent=1 // pred_check
      _
    $region19: #{tpu_custom_call.1} parent=1 // pred_check_branch
      %28 = sbr.rel (0) target = $region21
    $region20: #{tpu_custom_call.1} parent=1 // pred_region
      _
    $region21: #{tpu_custom_call.1} parent=1 // pred_fallthru
      _
    // Predicated region
    $region22: #{tpu_custom_call.1} parent=1 // pred_check
      _
    $region23: #{tpu_custom_call.1} parent=1 // pred_check_branch
      %30 = sbr.rel (0) target = $region25
    $region24: #{tpu_custom_call.1} parent=1 // pred_region
      _
    $region25: #{tpu_custom_call.1} parent=1 // pred_fallthru
      _
    // Predicated region
    $region26: #{tpu_custom_call.1} parent=1 // pred_check
      _
    $region27: #{tpu_custom_call.1} parent=1 // pred_check_branch
      %32 = sbr.rel (0) target = $region29
    $region28: #{tpu_custom_call.1} parent=1 // pred_region
      _
    $region29: #{tpu_custom_call.1} parent=1 // pred_fallthru
      _
    // Predicated region
    $region30: #{tpu_custom_call.1} parent=1 // pred_check
      _
    $region31: #{tpu_custom_call.1} parent=1 // pred_check_branch
      %34 = sbr.rel (0) target = $region33
    $region32: #{tpu_custom_call.1} parent=1 // pred_region
      _
    $region33: #{tpu_custom_call.1} parent=1 // pred_fallthru
      _
    // Predicated region
    $region34: #{tpu_custom_call.1} parent=1 // pred_check
      _
    $region35: #{tpu_custom_call.1} parent=1 // pred_check_branch
      %36 = sbr.rel (0) target = $region37
    $region36: #{tpu_custom_call.1} parent=1 // pred_region
      _
    $region37: #{tpu_custom_call.1} parent=1 // pred_fallthru
      _
    // Predicated region
    $region38: #{tpu_custom_call.1} parent=1 // pred_check
      _
    $region39: #{tpu_custom_call.1} parent=1 // pred_check_branch
      %38 = sbr.rel (0) target = $region41
    $region40: #{tpu_custom_call.1} parent=1 // pred_region
      _
    $region41: #{tpu_custom_call.1} parent=1 // pred_fallthru
      _
    // Predicated region
    $region42: #{tpu_custom_call.1} parent=1 // pred_check
      _
    $region43: #{tpu_custom_call.1} parent=1 // pred_check_branch
      %40 = sbr.rel (0) target = $region45
    $region44: #{tpu_custom_call.1} parent=1 // pred_region
      _
    $region45: #{tpu_custom_call.1} parent=1 // pred_fallthru
      _
    // Predicated region
    $region46: #{tpu_custom_call.1} parent=1 // pred_check
      _
    $region47: #{tpu_custom_call.1} parent=1 // pred_check_branch
      %42 = sbr.rel (0) target = $region49
    $region48: #{tpu_custom_call.1} parent=1 // pred_region
      _
    $region49: #{tpu_custom_call.1} parent=1 // pred_fallthru
      _
    // Predicated region
    $region50: #{tpu_custom_call.1} parent=1 // pred_check
      _
    $region51: #{tpu_custom_call.1} parent=1 // pred_check_branch
      %44 = sbr.rel (0) target = $region53
    $region52: #{tpu_custom_call.1} parent=1 // pred_region
      _
    $region53: #{tpu_custom_call.1} parent=1 // pred_fallthru
      _
    %v45 = vld [vmem:[%s0] sm:$0xff]
    %v46 = vld [vmem:[%s0 + $0x8] sm:$0xff]
    %v47 = vld [vmem:[%s0 + $0x10] sm:$0xff]
    %v48 = vld [vmem:[%s0 + $0x18] sm:$0xff]
    %v49 = vld [vmem:[%s0 + $0x20] sm:$0xff]
    %v50 = vld [vmem:[%s0 + $0x28] sm:$0xff]
    %v51 = vld [vmem:[%s0 + $0x30] sm:$0xff]
    %v52 = vld [vmem:[%s0 + $0x38] sm:$0xff]
    %v53 = vld [vmem:[%s0 + $0x40] sm:$0xff]
    %v54 = vld [vmem:[%s0 + $0x48] sm:$0xff]
    %v55 = vld [vmem:[%s0 + $0x50] sm:$0xff]
    %v56 = vld [vmem:[%s0 + $0x58] sm:$0xff]
    %v57 = vld [vmem:[%s0 + $0x60] sm:$0xff]
    %v58 = vld [vmem:[%s0 + $0x68] sm:$0xff]
    %v59 = vld [vmem:[%s0 + $0x70] sm:$0xff]
    %v60 = vld [vmem:[%s0 + $0x78] sm:$0xff]
    %v61 = vld [vmem:[%s1] sm:$0xff]
    %v62 = vld [vmem:[%s1 + $0x8] sm:$0xff]
    %v63 = vld [vmem:[%s1 + $0x10] sm:$0xff]
    %v64 = vld [vmem:[%s1 + $0x18] sm:$0xff]
    %v65 = vld [vmem:[%s2] sm:$0xff]
    %v66 = vld [vmem:[%s2 + $0x8] sm:$0xff]
    %v67 = vld [vmem:[%s2 + $0x10] sm:$0xff]
    %v68 = vld [vmem:[%s2 + $0x18] sm:$0xff]
    %70 = vset.pattern.permute.xlu0 0
    %71 = vperm.xlu0 %70, %v65
    %v72 = vpop.permute.xlu0 %71
    %75 = vset.pattern.permute.xlu0 0
    %76 = vperm.xlu0 %75, %v66
    %v77 = vpop.permute.xlu0 %76
    %80 = vset.pattern.permute.xlu0 0
    %81 = vperm.xlu0 %80, %v67
    %v82 = vpop.permute.xlu0 %81
    %85 = vset.pattern.permute.xlu0 0
    %86 = vperm.xlu0 %85, %v68
    %v87 = vpop.permute.xlu0 %86
    %vm89 = vcmask 130048
    %v91 = vsel %vm89, %v61, 0
    %v94 = vsel %vm89, %v62, 0
    %v97 = vsel %vm89, %v63, 0
    %v100 = vsel %vm89, %v64, 0
    %v103 = vsel %vm89, %v45, 0
    %v106 = vsel %vm89, %v46, 0
    %v109 = vsel %vm89, %v47, 0
    %v112 = vsel %vm89, %v48, 0
    %v115 = vsel %vm89, %v49, 0
    %v118 = vsel %vm89, %v50, 0
    %v121 = vsel %vm89, %v51, 0
    %v124 = vsel %vm89, %v52, 0
    %v127 = vsel %vm89, %v53, 0
    %v130 = vsel %vm89, %v54, 0
    %v133 = vsel %vm89, %v55, 0
    %v136 = vsel %vm89, %v56, 0
    %v139 = vsel %vm89, %v57, 0
    %v142 = vsel %vm89, %v58, 0
    %v145 = vsel %vm89, %v59, 0
    %v148 = vsel %vm89, %v60, 0
    %150 = vmatprep.subr.mxu0 0.0
    %151 = vmatpush1.xpose.msra.mxu0 %v103
    %152 = vmatprep.subr.mxu0 0.0
    %153 = vmatpush1.xpose.msra.mxu0 %v106
    %154 = vmatprep.subr.mxu0 0.0
    %155 = vmatpush1.xpose.msra.mxu0 %v109
    %156 = vmatprep.subr.mxu0 0.0
    %157 = vmatpush1.xpose.msra.mxu0 %v112
    %158 = vmatprep.subr.mxu0 0.0
    %159 = vmatpush1.xpose.msra.mxu0 %v115
    %160 = vmatprep.subr.mxu0 0.0
    %161 = vmatpush1.xpose.msra.mxu0 %v118
    %162 = vmatprep.subr.mxu0 0.0
    %163 = vmatpush1.xpose.msra.mxu0 %v121
    %164 = vmatprep.subr.mxu0 0.0
    %165 = vmatpush1.xpose.msra.mxu0 %v124
    %166 = vmatprep.subr.mxu0 0.0
    %167 = vmatpush1.xpose.msra.mxu0 %v127
    %168 = vmatprep.subr.mxu0 0.0
    %169 = vmatpush1.xpose.msra.mxu0 %v130
    %170 = vmatprep.subr.mxu0 0.0
    %171 = vmatpush1.xpose.msra.mxu0 %v133
    %172 = vmatprep.subr.mxu0 0.0
    %173 = vmatpush1.xpose.msra.mxu0 %v136
    %174 = vmatprep.subr.mxu0 0.0
    %175 = vmatpush1.xpose.msra.mxu0 %v139
    %176 = vmatprep.subr.mxu0 0.0
    %177 = vmatpush1.xpose.msra.mxu0 %v142
    %178 = vmatprep.subr.mxu0 0.0
    %179 = vmatpush1.xpose.msra.mxu0 %v145
    %180 = vmatprep.subr.mxu0 0.0
    %181 = vmatpush1.xpose.msra.mxu0 %v148
    %182 = vmatprep.subr.mxu0 0.0
    %183 = vmatpush1.xpose.msra.mxu0 0.0
    %184 = vmatprep.subr.mxu0 0.0
    %185 = vmatpush1.xpose.msra.mxu0 0.0
    %186 = vmatprep.subr.mxu0 0.0
    %187 = vmatpush1.xpose.msra.mxu0 0.0
    %188 = vmatprep.subr.mxu0 0.0
    %189 = vmatpush1.xpose.msra.mxu0 0.0
    %190 = vmatprep.subr.mxu0 0.0
    %191 = vmatpush1.xpose.msra.mxu0 0.0
    %192 = vmatprep.subr.mxu0 0.0
    %193 = vmatpush1.xpose.msra.mxu0 0.0
    %194 = vmatprep.subr.mxu0 0.0
    %195 = vmatpush1.xpose.msra.mxu0 0.0
    %196 = vmatprep.subr.mxu0 0.0
    %197 = vmatpush1.xpose.msra.mxu0 0.0
    %198 = vmatprep.subr.mxu0 0.0
    %199 = vmatpush1.xpose.msra.mxu0 0.0
    %200 = vmatprep.subr.mxu0 0.0
    %201 = vmatpush1.xpose.msra.mxu0 0.0
    %202 = vmatprep.subr.mxu0 0.0
    %203 = vmatpush1.xpose.msra.mxu0 0.0
    %204 = vmatprep.subr.mxu0 0.0
    %205 = vmatpush1.xpose.msra.mxu0 0.0
    %206 = vmatprep.subr.mxu0 0.0
    %207 = vmatpush1.xpose.msra.mxu0 0.0
    %208 = vmatprep.subr.mxu0 0.0
    %209 = vmatpush1.xpose.msra.mxu0 0.0
    %210 = vmatprep.subr.mxu0 0.0
    %211 = vmatpush1.xpose.msra.mxu0 0.0
    %212 = vmatprep.subr.mxu0 0.0
    %213 = vmatpush1.xpose.msra.mxu0 0.0
    %214 = vmatprep.mubr.f32.mxu0 0.0
    %215 = vmatmul.mubr.f32.gmra.mrb[0].mxu0 %v91
    %v216 = vpop.f32.mrb[0].mxu0
    %v217 = vadd.f32 %v72, %v216
    %v218 = vpop.f32.mrb[0].mxu0
    %219 = vmatprep.mubr.f32.mxu0 0.0
    %220 = vmatmul.mubr.f32.gmra.mrb[0].mxu0 %v94
    %v221 = vpop.f32.mrb[0].mxu0
    %v222 = vadd.f32 %v77, %v221
    %v223 = vpop.f32.mrb[0].mxu0
    %224 = vmatprep.mubr.f32.mxu0 0.0
    %225 = vmatmul.mubr.f32.gmra.mrb[0].mxu0 %v97
    %v226 = vpop.f32.mrb[0].mxu0
    %v227 = vadd.f32 %v82, %v226
    %v228 = vpop.f32.mrb[0].mxu0
    %229 = vmatprep.mubr.f32.mxu0 0.0
    %230 = vmatmul.mubr.f32.gmra.mrb[0].mxu0 %v100
    %v231 = vpop.f32.mrb[0].mxu0
    %v232 = vadd.f32 %v87, %v231
    %v233 = vpop.f32.mrb[0].mxu0
    %234 = vdwg.mxu0
    %v235 = vmax.f32 %v217, 0.0
    %v236 = vmax.f32 %v222, 0.0
    %v237 = vmax.f32 %v227, 0.0
    %v238 = vmax.f32 %v232, 0.0
    %v239 = vld [vmem:[%s3] sm:$0xff]
    %v240 = vld [vmem:[%s3 + $0x8] sm:$0xff]
    %v241 = vld [vmem:[%s3 + $0x10] sm:$0xff]
    %v242 = vld [vmem:[%s3 + $0x18] sm:$0xff]
    %v243 = vld [vmem:[%s3 + $0x20] sm:$0xff]
    %v244 = vld [vmem:[%s3 + $0x28] sm:$0xff]
    %v245 = vld [vmem:[%s3 + $0x30] sm:$0xff]
    %v246 = vld [vmem:[%s3 + $0x38] sm:$0xff]
    %v247 = vld [vmem:[%s4] sm:$0xff]
    %v248 = vld [vmem:[%s4 + $0x8] sm:$0xff]
    %v249 = vld [vmem:[%s4 + $0x10] sm:$0xff]
    %v250 = vld [vmem:[%s4 + $0x18] sm:$0xff]
    %v251 = vld [vmem:[%s4 + $0x20] sm:$0xff]
    %v252 = vld [vmem:[%s4 + $0x28] sm:$0xff]
    %v253 = vld [vmem:[%s4 + $0x30] sm:$0xff]
    %v254 = vld [vmem:[%s4 + $0x38] sm:$0xff]
    %256 = vset.pattern.permute.xlu0 0
    %257 = vperm.xlu0 %256, %v247
    %v258 = vpop.permute.xlu0 %257
    %261 = vset.pattern.permute.xlu0 0
    %262 = vperm.xlu0 %261, %v248
    %v263 = vpop.permute.xlu0 %262
    %266 = vset.pattern.permute.xlu0 0
    %267 = vperm.xlu0 %266, %v249
    %v268 = vpop.permute.xlu0 %267
    %271 = vset.pattern.permute.xlu0 0
    %272 = vperm.xlu0 %271, %v250
    %v273 = vpop.permute.xlu0 %272
    %276 = vset.pattern.permute.xlu0 0
    %277 = vperm.xlu0 %276, %v251
    %v278 = vpop.permute.xlu0 %277
    %281 = vset.pattern.permute.xlu0 0
    %282 = vperm.xlu0 %281, %v252
    %v283 = vpop.permute.xlu0 %282
    %286 = vset.pattern.permute.xlu0 0
    %287 = vperm.xlu0 %286, %v253
    %v288 = vpop.permute.xlu0 %287
    %291 = vset.pattern.permute.xlu0 0
    %292 = vperm.xlu0 %291, %v254
    %v293 = vpop.permute.xlu0 %292
    %vm295 = vcmask 261120
    %v297 = vsel %vm295, %v239, 0
    %v300 = vsel %vm295, %v240, 0
    %v303 = vsel %vm295, %v241, 0
    %v306 = vsel %vm295, %v242, 0
    %v309 = vsel %vm295, %v243, 0
    %v312 = vsel %vm295, %v244, 0
    %v315 = vsel %vm295, %v245, 0
    %v318 = vsel %vm295, %v246, 0
    %320 = vmatprep.subr.mxu0 0.0
    %321 = vmatpush1.msra.mxu0 %v235
    %322 = vmatprep.subr.mxu0 0.0
    %323 = vmatpush1.msra.mxu0 %v236
    %324 = vmatprep.subr.mxu0 0.0
    %325 = vmatpush1.msra.mxu0 %v237
    %326 = vmatprep.subr.mxu0 0.0
    %327 = vmatpush1.msra.mxu0 %v238
    %328 = vmatprep.subr.mxu0 0.0
    %329 = vmatpush1.msra.mxu0 0.0
    %330 = vmatprep.subr.mxu0 0.0
    %331 = vmatpush1.msra.mxu0 0.0
    %332 = vmatprep.subr.mxu0 0.0
    %333 = vmatpush1.msra.mxu0 0.0
    %334 = vmatprep.subr.mxu0 0.0
    %335 = vmatpush1.msra.mxu0 0.0
    %336 = vmatprep.subr.mxu0 0.0
    %337 = vmatpush1.msra.mxu0 0.0
    %338 = vmatprep.subr.mxu0 0.0
    %339 = vmatpush1.msra.mxu0 0.0
    %340 = vmatprep.subr.mxu0 0.0
    %341 = vmatpush1.msra.mxu0 0.0
    %342 = vmatprep.subr.mxu0 0.0
    %343 = vmatpush1.msra.mxu0 0.0
    %344 = vmatprep.subr.mxu0 0.0
    %345 = vmatpush1.msra.mxu0 0.0
    %346 = vmatprep.subr.mxu0 0.0
    %347 = vmatpush1.msra.mxu0 0.0
    %348 = vmatprep.subr.mxu0 0.0
    %349 = vmatpush1.msra.mxu0 0.0
    %350 = vmatprep.subr.mxu0 0.0
    %351 = vmatpush1.msra.mxu0 0.0
    %352 = vmatprep.subr.mxu0 0.0
    %353 = vmatpush1.msra.mxu0 0.0
    %354 = vmatprep.subr.mxu0 0.0
    %355 = vmatpush1.msra.mxu0 0.0
    %356 = vmatprep.subr.mxu0 0.0
    %357 = vmatpush1.msra.mxu0 0.0
    %358 = vmatprep.subr.mxu0 0.0
    %359 = vmatpush1.msra.mxu0 0.0
    %360 = vmatprep.subr.mxu0 0.0
    %361 = vmatpush1.msra.mxu0 0.0
    %362 = vmatprep.subr.mxu0 0.0
    %363 = vmatpush1.msra.mxu0 0.0
    %364 = vmatprep.subr.mxu0 0.0
    %365 = vmatpush1.msra.mxu0 0.0
    %366 = vmatprep.subr.mxu0 0.0
    %367 = vmatpush1.msra.mxu0 0.0
    %368 = vmatprep.subr.mxu0 0.0
    %369 = vmatpush1.msra.mxu0 0.0
    %370 = vmatprep.subr.mxu0 0.0
    %371 = vmatpush1.msra.mxu0 0.0
    %372 = vmatprep.subr.mxu0 0.0
    %373 = vmatpush1.msra.mxu0 0.0
    %374 = vmatprep.subr.mxu0 0.0
    %375 = vmatpush1.msra.mxu0 0.0
    %376 = vmatprep.subr.mxu0 0.0
    %377 = vmatpush1.msra.mxu0 0.0
    %378 = vmatprep.subr.mxu0 0.0
    %379 = vmatpush1.msra.mxu0 0.0
    %380 = vmatprep.subr.mxu0 0.0
    %381 = vmatpush1.msra.mxu0 0.0
    %382 = vmatprep.subr.mxu0 0.0
    %383 = vmatpush1.msra.mxu0 0.0
    %384 = vmatprep.mubr.f32.mxu0 0.0
    %385 = vmatmul.mubr.f32.gmra.mrb[0].mxu0 %v297
    %v386 = vpop.f32.mrb[0].mxu0
    %v387 = vadd.f32 %v258, %v386
    %v388 = vpop.f32.mrb[0].mxu0
    %389 = vmatprep.mubr.f32.mxu0 0.0
    %390 = vmatmul.mubr.f32.gmra.mrb[0].mxu0 %v300
    %v391 = vpop.f32.mrb[0].mxu0
    %v392 = vadd.f32 %v263, %v391
    %v393 = vpop.f32.mrb[0].mxu0
    %394 = vmatprep.mubr.f32.mxu0 0.0
    %395 = vmatmul.mubr.f32.gmra.mrb[0].mxu0 %v303
    %v396 = vpop.f32.mrb[0].mxu0
    %v397 = vadd.f32 %v268, %v396
    %v398 = vpop.f32.mrb[0].mxu0
    %399 = vmatprep.mubr.f32.mxu0 0.0
    %400 = vmatmul.mubr.f32.gmra.mrb[0].mxu0 %v306
    %v401 = vpop.f32.mrb[0].mxu0
    %v402 = vadd.f32 %v273, %v401
    %v403 = vpop.f32.mrb[0].mxu0
    %404 = vmatprep.mubr.f32.mxu0 0.0
    %405 = vmatmul.mubr.f32.gmra.mrb[0].mxu0 %v309
    %v406 = vpop.f32.mrb[0].mxu0
    %v407 = vadd.f32 %v278, %v406
    %v408 = vpop.f32.mrb[0].mxu0
    %409 = vmatprep.mubr.f32.mxu0 0.0
    %410 = vmatmul.mubr.f32.gmra.mrb[0].mxu0 %v312
    %v411 = vpop.f32.mrb[0].mxu0
    %v412 = vadd.f32 %v283, %v411
    %v413 = vpop.f32.mrb[0].mxu0
    %414 = vmatprep.mubr.f32.mxu0 0.0
    %415 = vmatmul.mubr.f32.gmra.mrb[0].mxu0 %v315
    %v416 = vpop.f32.mrb[0].mxu0
    %v417 = vadd.f32 %v288, %v416
    %v418 = vpop.f32.mrb[0].mxu0
    %419 = vmatprep.mubr.f32.mxu0 0.0
    %420 = vmatmul.mubr.f32.gmra.mrb[0].mxu0 %v318
    %v421 = vpop.f32.mrb[0].mxu0
    %v422 = vadd.f32 %v293, %v421
    %v423 = vpop.f32.mrb[0].mxu0
    %424 = vdwg.mxu0
    %v425 = vmax.f32 %v387, 0.0
    %v426 = vmax.f32 %v392, 0.0
    %v427 = vmax.f32 %v397, 0.0
    %v428 = vmax.f32 %v402, 0.0
    %v429 = vmax.f32 %v407, 0.0
    %v430 = vmax.f32 %v412, 0.0
    %v431 = vmax.f32 %v417, 0.0
    %v432 = vmax.f32 %v422, 0.0
    %v433 = vld [vmem:[%s5] sm:$0xff]
    %v434 = vld [vmem:[%s5 + $0x8] sm:$0xff]
    %v435 = vld [vmem:[%s5 + $0x10] sm:$0xff]
    %v436 = vld [vmem:[%s5 + $0x18] sm:$0xff]
    %v437 = vld [vmem:[%s6] sm:$0xff]
    %v438 = vld [vmem:[%s6 + $0x8] sm:$0xff]
    %v439 = vld [vmem:[%s6 + $0x10] sm:$0xff]
    %v440 = vld [vmem:[%s6 + $0x18] sm:$0xff]
    %442 = vset.pattern.permute.xlu0 0
    %443 = vperm.xlu0 %442, %v437
    %v444 = vpop.permute.xlu0 %443
    %447 = vset.pattern.permute.xlu0 0
    %448 = vperm.xlu0 %447, %v438
    %v449 = vpop.permute.xlu0 %448
    %452 = vset.pattern.permute.xlu0 0
    %453 = vperm.xlu0 %452, %v439
    %v454 = vpop.permute.xlu0 %453
    %457 = vset.pattern.permute.xlu0 0
    %458 = vperm.xlu0 %457, %v440
    %v459 = vpop.permute.xlu0 %458
    %vm461 = vcmask 523264
    %v463 = vsel %vm461, %v433, 0
    %v466 = vsel %vm461, %v434, 0
    %v469 = vsel %vm461, %v435, 0
    %v472 = vsel %vm461, %v436, 0
    %474 = vmatprep.subr.mxu0 0.0
    %475 = vmatpush1.msra.mxu0 %v425
    %476 = vmatprep.subr.mxu0 0.0
    %477 = vmatpush1.msra.mxu0 %v426
    %478 = vmatprep.subr.mxu0 0.0
    %479 = vmatpush1.msra.mxu0 %v427
    %480 = vmatprep.subr.mxu0 0.0
    %481 = vmatpush1.msra.mxu0 %v428
    %482 = vmatprep.subr.mxu0 0.0
    %483 = vmatpush1.msra.mxu0 %v429
    %484 = vmatprep.subr.mxu0 0.0
    %485 = vmatpush1.msra.mxu0 %v430
    %486 = vmatprep.subr.mxu0 0.0
    %487 = vmatpush1.msra.mxu0 %v431
    %488 = vmatprep.subr.mxu0 0.0
    %489 = vmatpush1.msra.mxu0 %v432
    %490 = vmatprep.subr.mxu0 0.0
    %491 = vmatpush1.msra.mxu0 0.0
    %492 = vmatprep.subr.mxu0 0.0
    %493 = vmatpush1.msra.mxu0 0.0
    %494 = vmatprep.subr.mxu0 0.0
    %495 = vmatpush1.msra.mxu0 0.0
    %496 = vmatprep.subr.mxu0 0.0
    %497 = vmatpush1.msra.mxu0 0.0
    %498 = vmatprep.subr.mxu0 0.0
    %499 = vmatpush1.msra.mxu0 0.0
    %500 = vmatprep.subr.mxu0 0.0
    %501 = vmatpush1.msra.mxu0 0.0
    %502 = vmatprep.subr.mxu0 0.0
    %503 = vmatpush1.msra.mxu0 0.0
    %504 = vmatprep.subr.mxu0 0.0
    %505 = vmatpush1.msra.mxu0 0.0
    %506 = vmatprep.subr.mxu0 0.0
    %507 = vmatpush1.msra.mxu0 0.0
    %508 = vmatprep.subr.mxu0 0.0
    %509 = vmatpush1.msra.mxu0 0.0
    %510 = vmatprep.subr.mxu0 0.0
    %511 = vmatpush1.msra.mxu0 0.0
    %512 = vmatprep.subr.mxu0 0.0
    %513 = vmatpush1.msra.mxu0 0.0
    %514 = vmatprep.subr.mxu0 0.0
    %515 = vmatpush1.msra.mxu0 0.0
    %516 = vmatprep.subr.mxu0 0.0
    %517 = vmatpush1.msra.mxu0 0.0
    %518 = vmatprep.subr.mxu0 0.0
    %519 = vmatpush1.msra.mxu0 0.0
    %520 = vmatprep.subr.mxu0 0.0
    %521 = vmatpush1.msra.mxu0 0.0
    %522 = vmatprep.subr.mxu0 0.0
    %523 = vmatpush1.msra.mxu0 0.0
    %524 = vmatprep.subr.mxu0 0.0
    %525 = vmatpush1.msra.mxu0 0.0
    %526 = vmatprep.subr.mxu0 0.0
    %527 = vmatpush1.msra.mxu0 0.0
    %528 = vmatprep.subr.mxu0 0.0
    %529 = vmatpush1.msra.mxu0 0.0
    %530 = vmatprep.subr.mxu0 0.0
    %531 = vmatpush1.msra.mxu0 0.0
    %532 = vmatprep.subr.mxu0 0.0
    %533 = vmatpush1.msra.mxu0 0.0
    %534 = vmatprep.subr.mxu0 0.0
    %535 = vmatpush1.msra.mxu0 0.0
    %536 = vmatprep.subr.mxu0 0.0
    %537 = vmatpush1.msra.mxu0 0.0
    %538 = vmatprep.mubr.f32.mxu0 0.0
    %539 = vmatmul.mubr.f32.gmra.mrb[0].mxu0 %v463
    %v540 = vpop.f32.mrb[0].mxu0
    %v541 = vadd.f32 %v444, %v540
    %v542 = vpop.f32.mrb[0].mxu0
    %543 = vmatprep.mubr.f32.mxu0 0.0
    %544 = vmatmul.mubr.f32.gmra.mrb[0].mxu0 %v466
    %v545 = vpop.f32.mrb[0].mxu0
    %v546 = vadd.f32 %v449, %v545
    %v547 = vpop.f32.mrb[0].mxu0
    %548 = vmatprep.mubr.f32.mxu0 0.0
    %549 = vmatmul.mubr.f32.gmra.mrb[0].mxu0 %v469
    %v550 = vpop.f32.mrb[0].mxu0
    %v551 = vadd.f32 %v454, %v550
    %v552 = vpop.f32.mrb[0].mxu0
    %553 = vmatprep.mubr.f32.mxu0 0.0
    %554 = vmatmul.mubr.f32.gmra.mrb[0].mxu0 %v472
    %v555 = vpop.f32.mrb[0].mxu0
    %v556 = vadd.f32 %v459, %v555
    %v557 = vpop.f32.mrb[0].mxu0
    %558 = vdwg.mxu0
    %v559 = vtanh.pop %v541
    %v560 = vtanh.pop %v546
    %v561 = vtanh.pop %v551
    %v562 = vtanh.pop %v556
    %v563 = vld [vmem:[%s7] sm:$0xff]
    %v564 = vld [vmem:[%s7 + $0x8] sm:$0xff]
    %v565 = vld [vmem:[%s7 + $0x10] sm:$0xff]
    %v566 = vld [vmem:[%s7 + $0x18] sm:$0xff]
    %v567 = vld [vmem:[%s8] sm:$0xff]
    %v568 = vld [vmem:[%s8 + $0x8] sm:$0xff]
    %v569 = vld [vmem:[%s8 + $0x10] sm:$0xff]
    %v570 = vld [vmem:[%s8 + $0x18] sm:$0xff]
    %572 = vset.pattern.permute.xlu0 0
    %573 = vperm.xlu0 %572, %v567
    %v574 = vpop.permute.xlu0 %573
    %577 = vset.pattern.permute.xlu0 0
    %578 = vperm.xlu0 %577, %v568
    %v579 = vpop.permute.xlu0 %578
    %582 = vset.pattern.permute.xlu0 0
    %583 = vperm.xlu0 %582, %v569
    %v584 = vpop.permute.xlu0 %583
    %587 = vset.pattern.permute.xlu0 0
    %588 = vperm.xlu0 %587, %v570
    %v589 = vpop.permute.xlu0 %588
    %v592 = vsel %vm295, %v563, 0
    %v595 = vsel %vm295, %v564, 0
    %v598 = vsel %vm295, %v565, 0
    %v601 = vsel %vm295, %v566, 0
    %603 = vmatprep.subr.mxu0 0.0
    %604 = vmatpush1.msra.mxu0 %v559
    %605 = vmatprep.subr.mxu0 0.0
    %606 = vmatpush1.msra.mxu0 %v560
    %607 = vmatprep.subr.mxu0 0.0
    %608 = vmatpush1.msra.mxu0 %v561
    %609 = vmatprep.subr.mxu0 0.0
    %610 = vmatpush1.msra.mxu0 %v562
    %611 = vmatprep.subr.mxu0 0.0
    %612 = vmatpush1.msra.mxu0 0.0
    %613 = vmatprep.subr.mxu0 0.0
    %614 = vmatpush1.msra.mxu0 0.0
    %615 = vmatprep.subr.mxu0 0.0
    %616 = vmatpush1.msra.mxu0 0.0
    %617 = vmatprep.subr.mxu0 0.0
    %618 = vmatpush1.msra.mxu0 0.0
    %619 = vmatprep.subr.mxu0 0.0
    %620 = vmatpush1.msra.mxu0 0.0
    %621 = vmatprep.subr.mxu0 0.0
    %622 = vmatpush1.msra.mxu0 0.0
    %623 = vmatprep.subr.mxu0 0.0
    %624 = vmatpush1.msra.mxu0 0.0
    %625 = vmatprep.subr.mxu0 0.0
    %626 = vmatpush1.msra.mxu0 0.0
    %627 = vmatprep.subr.mxu0 0.0
    %628 = vmatpush1.msra.mxu0 0.0
    %629 = vmatprep.subr.mxu0 0.0
    %630 = vmatpush1.msra.mxu0 0.0
    %631 = vmatprep.subr.mxu0 0.0
    %632 = vmatpush1.msra.mxu0 0.0
    %633 = vmatprep.subr.mxu0 0.0
    %634 = vmatpush1.msra.mxu0 0.0
    %635 = vmatprep.subr.mxu0 0.0
    %636 = vmatpush1.msra.mxu0 0.0
    %637 = vmatprep.subr.mxu0 0.0
    %638 = vmatpush1.msra.mxu0 0.0
    %639 = vmatprep.subr.mxu0 0.0
    %640 = vmatpush1.msra.mxu0 0.0
    %641 = vmatprep.subr.mxu0 0.0
    %642 = vmatpush1.msra.mxu0 0.0
    %643 = vmatprep.subr.mxu0 0.0
    %644 = vmatpush1.msra.mxu0 0.0
    %645 = vmatprep.subr.mxu0 0.0
    %646 = vmatpush1.msra.mxu0 0.0
    %647 = vmatprep.subr.mxu0 0.0
    %648 = vmatpush1.msra.mxu0 0.0
    %649 = vmatprep.subr.mxu0 0.0
    %650 = vmatpush1.msra.mxu0 0.0
    %651 = vmatprep.subr.mxu0 0.0
    %652 = vmatpush1.msra.mxu0 0.0
    %653 = vmatprep.subr.mxu0 0.0
    %654 = vmatpush1.msra.mxu0 0.0
    %655 = vmatprep.subr.mxu0 0.0
    %656 = vmatpush1.msra.mxu0 0.0
    %657 = vmatprep.subr.mxu0 0.0
    %658 = vmatpush1.msra.mxu0 0.0
    %659 = vmatprep.subr.mxu0 0.0
    %660 = vmatpush1.msra.mxu0 0.0
    %661 = vmatprep.subr.mxu0 0.0
    %662 = vmatpush1.msra.mxu0 0.0
    %663 = vmatprep.subr.mxu0 0.0
    %664 = vmatpush1.msra.mxu0 0.0
    %665 = vmatprep.subr.mxu0 0.0
    %666 = vmatpush1.msra.mxu0 0.0
    %667 = vmatprep.mubr.f32.mxu0 0.0
    %668 = vmatmul.mubr.f32.gmra.mrb[0].mxu0 %v592
    %v669 = vpop.f32.mrb[0].mxu0
    %v670 = vadd.f32 %v574, %v669
    %v671 = vpop.f32.mrb[0].mxu0
    %672 = vmatprep.mubr.f32.mxu0 0.0
    %673 = vmatmul.mubr.f32.gmra.mrb[0].mxu0 %v595
    %v674 = vpop.f32.mrb[0].mxu0
    %v675 = vadd.f32 %v579, %v674
    %v676 = vpop.f32.mrb[0].mxu0
    %677 = vmatprep.mubr.f32.mxu0 0.0
    %678 = vmatmul.mubr.f32.gmra.mrb[0].mxu0 %v598
    %v679 = vpop.f32.mrb[0].mxu0
    %v680 = vadd.f32 %v584, %v679
    %v681 = vpop.f32.mrb[0].mxu0
    %682 = vmatprep.mubr.f32.mxu0 0.0
    %683 = vmatmul.mubr.f32.gmra.mrb[0].mxu0 %v601
    %v684 = vpop.f32.mrb[0].mxu0
    %v685 = vadd.f32 %v589, %v684
    %v686 = vpop.f32.mrb[0].mxu0
    %687 = vdwg.mxu0
    %v688 = vmax.f32 %v670, 0.0
    %v689 = vmax.f32 %v675, 0.0
    %v690 = vmax.f32 %v680, 0.0
    %v691 = vmax.f32 %v685, 0.0
    %v692 = vld [vmem:[%s9] sm:$0xff]
    %v693 = vld [vmem:[%s9 + $0x8] sm:$0xff]
    %v694 = vld [vmem:[%s10] sm:$0xff]
    %v695 = vld [vmem:[%s10 + $0x8] sm:$0xff]
    %697 = vset.pattern.permute.xlu0 0
    %698 = vperm.xlu0 %697, %v694
    %v699 = vpop.permute.xlu0 %698
    %702 = vset.pattern.permute.xlu0 0
    %703 = vperm.xlu0 %702, %v695
    %v704 = vpop.permute.xlu0 %703
    %v707 = vsel %vm295, %v692, 0
    %v710 = vsel %vm295, %v693, 0
    %712 = vmatprep.subr.mxu0 0.0
    %713 = vmatpush1.msra.mxu0 %v688
    %714 = vmatprep.subr.mxu0 0.0
    %715 = vmatpush1.msra.mxu0 %v689
    %716 = vmatprep.subr.mxu0 0.0
    %717 = vmatpush1.msra.mxu0 %v690
    %718 = vmatprep.subr.mxu0 0.0
    %719 = vmatpush1.msra.mxu0 %v691
    %720 = vmatprep.subr.mxu0 0.0
    %721 = vmatpush1.msra.mxu0 0.0
    %722 = vmatprep.subr.mxu0 0.0
    %723 = vmatpush1.msra.mxu0 0.0
    %724 = vmatprep.subr.mxu0 0.0
    %725 = vmatpush1.msra.mxu0 0.0
    %726 = vmatprep.subr.mxu0 0.0
    %727 = vmatpush1.msra.mxu0 0.0
    %728 = vmatprep.subr.mxu0 0.0
    %729 = vmatpush1.msra.mxu0 0.0
    %730 = vmatprep.subr.mxu0 0.0
    %731 = vmatpush1.msra.mxu0 0.0
    %732 = vmatprep.subr.mxu0 0.0
    %733 = vmatpush1.msra.mxu0 0.0
    %734 = vmatprep.subr.mxu0 0.0
    %735 = vmatpush1.msra.mxu0 0.0
    %736 = vmatprep.subr.mxu0 0.0
    %737 = vmatpush1.msra.mxu0 0.0
    %738 = vmatprep.subr.mxu0 0.0
    %739 = vmatpush1.msra.mxu0 0.0
    %740 = vmatprep.subr.mxu0 0.0
    %741 = vmatpush1.msra.mxu0 0.0
    %742 = vmatprep.subr.mxu0 0.0
    %743 = vmatpush1.msra.mxu0 0.0
    %744 = vmatprep.subr.mxu0 0.0
    %745 = vmatpush1.msra.mxu0 0.0
    %746 = vmatprep.subr.mxu0 0.0
    %747 = vmatpush1.msra.mxu0 0.0
    %748 = vmatprep.subr.mxu0 0.0
    %749 = vmatpush1.msra.mxu0 0.0
    %750 = vmatprep.subr.mxu0 0.0
    %751 = vmatpush1.msra.mxu0 0.0
    %752 = vmatprep.subr.mxu0 0.0
    %753 = vmatpush1.msra.mxu0 0.0
    %754 = vmatprep.subr.mxu0 0.0
    %755 = vmatpush1.msra.mxu0 0.0
    %756 = vmatprep.subr.mxu0 0.0
    %757 = vmatpush1.msra.mxu0 0.0
    %758 = vmatprep.subr.mxu0 0.0
    %759 = vmatpush1.msra.mxu0 0.0
    %760 = vmatprep.subr.mxu0 0.0
    %761 = vmatpush1.msra.mxu0 0.0
    %762 = vmatprep.subr.mxu0 0.0
    %763 = vmatpush1.msra.mxu0 0.0
    %764 = vmatprep.subr.mxu0 0.0
    %765 = vmatpush1.msra.mxu0 0.0
    %766 = vmatprep.subr.mxu0 0.0
    %767 = vmatpush1.msra.mxu0 0.0
    %768 = vmatprep.subr.mxu0 0.0
    %769 = vmatpush1.msra.mxu0 0.0
    %770 = vmatprep.subr.mxu0 0.0
    %771 = vmatpush1.msra.mxu0 0.0
    %772 = vmatprep.subr.mxu0 0.0
    %773 = vmatpush1.msra.mxu0 0.0
    %774 = vmatprep.subr.mxu0 0.0
    %775 = vmatpush1.msra.mxu0 0.0
    %776 = vmatprep.mubr.f32.mxu0 0.0
    %777 = vmatmul.mubr.f32.gmra.mrb[0].mxu0 %v707
    %v778 = vpop.f32.mrb[0].mxu0
    %v779 = vadd.f32 %v699, %v778
    %v780 = vpop.f32.mrb[0].mxu0
    %781 = vmatprep.mubr.f32.mxu0 0.0
    %782 = vmatmul.mubr.f32.gmra.mrb[0].mxu0 %v710
    %v783 = vpop.f32.mrb[0].mxu0
    %v784 = vadd.f32 %v704, %v783
    %v785 = vpop.f32.mrb[0].mxu0
    %786 = vdwg.mxu0
    %v787 = vmax.f32 %v779, 0.0
    %v788 = vmax.f32 %v784, 0.0
    %v789 = vld [vmem:[%s11] sm:$0xff]
    %v790 = vld [vmem:[%s12] sm:$0xff]
    %792 = vset.pattern.permute.xlu0 0
    %793 = vperm.xlu0 %792, %v790
    %v794 = vpop.permute.xlu0 %793
    %v797 = vsel %vm89, %v789, 0
    %799 = vmatprep.subr.mxu0 0.0
    %800 = vmatpush1.msra.mxu0 %v787
    %801 = vmatprep.subr.mxu0 0.0
    %802 = vmatpush1.msra.mxu0 %v788
    %803 = vmatprep.subr.mxu0 0.0
    %804 = vmatpush1.msra.mxu0 0.0
    %805 = vmatprep.subr.mxu0 0.0
    %806 = vmatpush1.msra.mxu0 0.0
    %807 = vmatprep.subr.mxu0 0.0
    %808 = vmatpush1.msra.mxu0 0.0
    %809 = vmatprep.subr.mxu0 0.0
    %810 = vmatpush1.msra.mxu0 0.0
    %811 = vmatprep.subr.mxu0 0.0
    %812 = vmatpush1.msra.mxu0 0.0
    %813 = vmatprep.subr.mxu0 0.0
    %814 = vmatpush1.msra.mxu0 0.0
    %815 = vmatprep.subr.mxu0 0.0
    %816 = vmatpush1.msra.mxu0 0.0
    %817 = vmatprep.subr.mxu0 0.0
    %818 = vmatpush1.msra.mxu0 0.0
    %819 = vmatprep.subr.mxu0 0.0
    %820 = vmatpush1.msra.mxu0 0.0
    %821 = vmatprep.subr.mxu0 0.0
    %822 = vmatpush1.msra.mxu0 0.0
    %823 = vmatprep.subr.mxu0 0.0
    %824 = vmatpush1.msra.mxu0 0.0
    %825 = vmatprep.subr.mxu0 0.0
    %826 = vmatpush1.msra.mxu0 0.0
    %827 = vmatprep.subr.mxu0 0.0
    %828 = vmatpush1.msra.mxu0 0.0
    %829 = vmatprep.subr.mxu0 0.0
    %830 = vmatpush1.msra.mxu0 0.0
    %831 = vmatprep.subr.mxu0 0.0
    %832 = vmatpush1.msra.mxu0 0.0
    %833 = vmatprep.subr.mxu0 0.0
    %834 = vmatpush1.msra.mxu0 0.0
    %835 = vmatprep.subr.mxu0 0.0
    %836 = vmatpush1.msra.mxu0 0.0
    %837 = vmatprep.subr.mxu0 0.0
    %838 = vmatpush1.msra.mxu0 0.0
    %839 = vmatprep.subr.mxu0 0.0
    %840 = vmatpush1.msra.mxu0 0.0
    %841 = vmatprep.subr.mxu0 0.0
    %842 = vmatpush1.msra.mxu0 0.0
    %843 = vmatprep.subr.mxu0 0.0
    %844 = vmatpush1.msra.mxu0 0.0
    %845 = vmatprep.subr.mxu0 0.0
    %846 = vmatpush1.msra.mxu0 0.0
    %847 = vmatprep.subr.mxu0 0.0
    %848 = vmatpush1.msra.mxu0 0.0
    %849 = vmatprep.subr.mxu0 0.0
    %850 = vmatpush1.msra.mxu0 0.0
    %851 = vmatprep.subr.mxu0 0.0
    %852 = vmatpush1.msra.mxu0 0.0
    %853 = vmatprep.subr.mxu0 0.0
    %854 = vmatpush1.msra.mxu0 0.0
    %855 = vmatprep.subr.mxu0 0.0
    %856 = vmatpush1.msra.mxu0 0.0
    %857 = vmatprep.subr.mxu0 0.0
    %858 = vmatpush1.msra.mxu0 0.0
    %859 = vmatprep.subr.mxu0 0.0
    %860 = vmatpush1.msra.mxu0 0.0
    %861 = vmatprep.subr.mxu0 0.0
    %862 = vmatpush1.msra.mxu0 0.0
    %863 = vmatprep.mubr.f32.mxu0 0.0
    %864 = vmatmul.mubr.f32.gmra.mrb[0].mxu0 %v797
    %v865 = vpop.f32.mrb[0].mxu0
    %v866 = vadd.f32 %v794, %v865
    %v867 = vpop.f32.mrb[0].mxu0
    %868 = vdwg.mxu0
    %v869 = vtanh.pop %v866
    %870 = vst [vmem:[#allocation2] sm:$0xff] %v869
    // Predicated region
    $region54: #{tpu_custom_call.1} parent=1 // pred_check
      _
    $region55: #{tpu_custom_call.1} parent=1 // pred_check_branch
      %872 = sbr.rel (0) target = $region57
    $region56: #{tpu_custom_call.1} parent=1 // pred_region
      %s874 = ssub.s32 128, 128
      %875 = vsyncadd [#allocation3], %s874
      %s877 = sshll.u32 [#allocation2], 4
      %s878 = int_to_ptr.vmem [resolvable:$true] %s877
      %880 = dma.vmem_to_hbm [thread:$0]  %s878, 128, %s13, [#allocation3]
    $region57: #{tpu_custom_call.1} parent=1 // pred_fallthru
      _
    // Predicated region
    $region58: #{tpu_custom_call.1} parent=1 // pred_check
      _
    $region59: #{tpu_custom_call.1} parent=1 // pred_check_branch
      %882 = sbr.rel (0) target = $region61
    $region60: #{tpu_custom_call.1} parent=1 // pred_region
      %883 = dma.done [#allocation3], 128
    $region61: #{tpu_custom_call.1} parent=1 // pred_fallthru
      _
    %884 = vsyncpa [#allocation3], 1

</llo_original>
